<compile_context>
chip_gen: v5e
topology: v5e:2x2
jax: 0.10.0
libtpu: 0.0.40
codegen_flags: <defaults>
</compile_context>

<pallas_src>
import functools

import jax
import jax.numpy as jnp
from jax.experimental import pallas as pl
from jax.experimental.pallas import tpu as pltpu


def _round_up(x, m):
    return ((x + m - 1) // m) * m


def _conv_matmul_kernel(p_ref, w_ref, y_ref, sum_ref, ssq_ref):
    """One row-tile of the im2col matmul + per-tile partial channel stats."""
    # bf16 x bf16 -> f32 accumulation on the MXU.
    y = jnp.dot(p_ref[...], w_ref[...], preferred_element_type=jnp.float32)
    y_ref[...] = y.astype(y_ref.dtype)
    # Disjoint per-block partial stats (no cross-iteration accumulation), so the
    # grid axis stays "parallel"; the cheap cross-block reduction happens in glue.
    s = jnp.sum(y, axis=0, keepdims=True)          # (1, Cp)
    q = jnp.sum(y * y, axis=0, keepdims=True)      # (1, Cp)
    sum_ref[...] = s[None]                         # (1, 1, Cp)
    ssq_ref[...] = q[None]


def _bn_relu_kernel(y_ref, scale_ref, shift_ref, o_ref, *, relu):
    o = y_ref[...].astype(jnp.float32) * scale_ref[...] + shift_ref[...]
    if relu:
        o = jnp.maximum(o, 0.0)
    o_ref[...] = o


def conv2d_bn_relu(x_nchw, weight_oihw, gamma, beta, *, stride=1, padding=0,
                   dilation=1, relu=True, eps=1e-5,
                   compute_dtype=jnp.bfloat16, tm=256, ew_blocks=4):
    N, Cin, H, W = x_nchw.shape
    Cout, Cin_w, KH, KW = weight_oihw.shape
    assert Cin == Cin_w
    Ho = (H + 2 * padding - dilation * (KH - 1) - 1) // stride + 1
    Wo = (W + 2 * padding - dilation * (KW - 1) - 1) // stride + 1

    M = N * Ho * Wo
    K = KH * KW * Cin
    Cp = _round_up(Cout, 128)                      # lane-dense channel dim

    # ---- tiling: matmul row tile tm_mm; elementwise pass uses a bigger tile ----
    tm_mm = min(tm, _round_up(M, 8))
    ew_factor = min(ew_blocks, pl.cdiv(M, tm_mm))
    tm_ew = tm_mm * ew_factor                      # multiple of tm_mm
    Mp = _round_up(M, tm_ew)                       # multiple of both tiles
    n_mm = Mp // tm_mm
    n_ew = Mp // tm_ew

    # ---- glue: NCHW -> NHWC, pad, im2col (column order: kh, kw, cin) ----
    x = jnp.transpose(x_nchw, (0, 2, 3, 1)).astype(jnp.float32)
    xp = jnp.pad(x, ((0, 0), (padding, padding), (padding, padding), (0, 0)))
    cols = []
    for kh in range(KH):
        for kw in range(KW):
            h0 = kh * dilation
            w0 = kw * dilation
            cols.append(xp[:, h0:h0 + (Ho - 1) * stride + 1:stride,
                           w0:w0 + (Wo - 1) * stride + 1:stride, :])
    patches = jnp.concatenate(cols, axis=-1).reshape(M, K)
    patches = jnp.pad(patches, ((0, Mp - M), (0, 0))).astype(compute_dtype)

    w_mat = jnp.transpose(weight_oihw, (2, 3, 1, 0)).reshape(K, Cout)
    w_mat = jnp.pad(w_mat.astype(jnp.float32),
                    ((0, 0), (0, Cp - Cout))).astype(compute_dtype)

    # ---- Pallas kernel 1: conv matmul + per-row-block channel stats ----
    y, psum, pssq = pl.pallas_call(
        _conv_matmul_kernel,
        out_shape=(jax.ShapeDtypeStruct((Mp, Cp), compute_dtype),
                   jax.ShapeDtypeStruct((n_mm, 1, Cp), jnp.float32),
                   jax.ShapeDtypeStruct((n_mm, 1, Cp), jnp.float32)),
        grid=(n_mm,),
        in_specs=[pl.BlockSpec((tm_mm, K), lambda i: (i, 0)),
                  pl.BlockSpec((K, Cp), lambda i: (0, 0))],   # weights stay resident
        out_specs=(pl.BlockSpec((tm_mm, Cp), lambda i: (i, 0)),
                   pl.BlockSpec((1, 1, Cp), lambda i: (i, 0, 0)),
                   pl.BlockSpec((1, 1, Cp), lambda i: (i, 0, 0))),
        compiler_params=pltpu.CompilerParams(
            dimension_semantics=("parallel",)),
    )(patches, w_mat)

    # ---- glue: BatchNorm2d training-mode stats (biased var over N,H,W) ----
    ysum = jnp.sum(psum, axis=(0, 1))              # (Cp,)  padded rows are all-zero
    yssq = jnp.sum(pssq, axis=(0, 1))
    mean = ysum / M
    var = jnp.maximum(yssq / M - mean * mean, 0.0)  # clamp one-pass cancellation
    g = jnp.pad(gamma.astype(jnp.float32), (0, Cp - Cout))
    b = jnp.pad(beta.astype(jnp.float32), (0, Cp - Cout))
    scale_v = g * jax.lax.rsqrt(var + eps)
    shift_v = b - mean * scale_v
    scale = scale_v.reshape(1, Cp)
    shift = shift_v.reshape(1, Cp)

    # ---- Pallas kernel 2: fused BN affine + ReLU (large lane-dense tiles) ----
    out = pl.pallas_call(
        functools.partial(_bn_relu_kernel, relu=relu),
        out_shape=jax.ShapeDtypeStruct((Mp, Cp), jnp.float32),
        grid=(n_ew,),
        in_specs=[pl.BlockSpec((tm_ew, Cp), lambda i: (i, 0)),
                  pl.BlockSpec((1, Cp), lambda i: (0, 0)),
                  pl.BlockSpec((1, Cp), lambda i: (0, 0))],
        out_specs=pl.BlockSpec((tm_ew, Cp), lambda i: (i, 0)),
        compiler_params=pltpu.CompilerParams(
            dimension_semantics=("parallel",)),
    )(y, scale, shift)

    out = out[:M, :Cout].reshape(N, Ho, Wo, Cout)
    return jnp.transpose(out, (0, 3, 1, 2))        # back to NCHW


def _reference(x, w, gamma, beta, *, stride, padding, dilation, relu, eps=1e-5):
    y = jax.lax.conv_general_dilated(
        x, w, window_strides=(stride, stride),
        padding=((padding, padding), (padding, padding)),
        rhs_dilation=(dilation, dilation),
        dimension_numbers=('NCHW', 'OIHW', 'NCHW'))
    mean = jnp.mean(y, axis=(0, 2, 3), keepdims=True)
    var = jnp.var(y, axis=(0, 2, 3), keepdims=True)   # biased, as in BN training mode
    y = ((y - mean) / jnp.sqrt(var + eps)
         * gamma.reshape(1, -1, 1, 1) + beta.reshape(1, -1, 1, 1))
    return jnp.maximum(y, 0.0) if relu else y


if __name__ == "__main__":
    key = jax.random.PRNGKey(0)
    k_x, k_w, k_g, k_b = jax.random.split(key, 4)

    # Small shapes consistent with the module: Conv2dBnRelu(4, 8, kernel_size=3,
    # stride=1, padding=1), input NCHW (2, 4, 16, 16).
    N, Cin, H, W = 2, 4, 16, 16
    Cout, KH, KW = 8, 3, 3
    stride, padding, dilation, relu = 1, 1, 1, True

    x = jax.random.normal(k_x, (N, Cin, H, W), dtype=jnp.float32)
    weight = jax.random.normal(k_w, (Cout, Cin, KH, KW), dtype=jnp.float32) * 0.1
    gamma = 1.0 + 0.1 * jax.random.normal(k_g, (Cout,), dtype=jnp.float32)
    beta = 0.1 * jax.random.normal(k_b, (Cout,), dtype=jnp.float32)

    out = conv2d_bn_relu(x, weight, gamma, beta, stride=stride, padding=padding,
                         dilation=dilation, relu=relu)
    out = jax.block_until_ready(out)

    ref = _reference(x, weight, gamma, beta, stride=stride, padding=padding,
                     dilation=dilation, relu=relu)
    assert out.shape == ref.shape == (N, Cout, H, W), (out.shape, ref.shape)
    # bf16 matmul operands + bf16 intermediate vs. an all-f32 reference: after BN
    # normalisation the expected deviation is a few 1e-2 in the worst tail, so the
    # tolerance is set accordingly (tighten with compute_dtype=jnp.float32).
    err = float(jnp.max(jnp.abs(out - ref)))
    assert jnp.allclose(out, ref, atol=5e-2, rtol=5e-2), err

    print("KERNEL_OK")
</pallas_src>

<mosaic_0001>
module attributes {stable_mosaic.version = 11 : i64} {
  func.func @_conv_matmul_kernel(%arg0: i32, %arg1: memref<256x36xbf16, #tpu.memory_space<vmem>>, %arg2: memref<36x128xbf16, #tpu.memory_space<vmem>>, %arg3: memref<256x128xbf16, #tpu.memory_space<vmem>>, %arg4: memref<1x1x128xf32, #tpu.memory_space<vmem>>, %arg5: memref<1x1x128xf32, #tpu.memory_space<vmem>>) attributes {dimension_semantics = [#tpu.dimension_semantics<parallel>], iteration_bounds = array<i64: 2>, scalar_prefetch = 0 : i64, scratch_operands = 0 : i64, tpu.core_type = #tpu.core_type<tc>, window_params = [{transform_indices = @transform_0, window_bounds = array<i64: 256, 36>}, {pipeline_mode = #tpu.pipeline_mode<synchronous>, transform_indices = @transform_1, window_bounds = array<i64: 36, 128>}, {transform_indices = @transform_2, window_bounds = array<i64: 256, 128>}, {transform_indices = @transform_3, window_bounds = array<i64: 1, 1, 128>}, {transform_indices = @transform_4, window_bounds = array<i64: 1, 1, 128>}]} {
    %c0 = arith.constant 0 : index
    %c0_0 = arith.constant 0 : index
    %0 = vector.load %arg1[%c0, %c0_0] : memref<256x36xbf16, #tpu.memory_space<vmem>>, vector<256x36xbf16>
    %c0_1 = arith.constant 0 : index
    %c0_2 = arith.constant 0 : index
    %1 = vector.load %arg2[%c0_1, %c0_2] : memref<36x128xbf16, #tpu.memory_space<vmem>>, vector<36x128xbf16>
    %cst = arith.constant dense<0.000000e+00> : vector<256x128xf32>
    %2 = tpu.matmul %0, %1, %cst {dimension_numbers = #tpu.dot_dimension_numbers<[1], [0], [0], [1], [0, 0, 1, 1], [], []>} : vector<256x36xbf16>, vector<36x128xbf16>, vector<256x128xf32> -> vector<256x128xf32>
    %3 = arith.truncf %2 : vector<256x128xf32> to vector<256x128xbf16>
    %c0_3 = arith.constant 0 : index
    %c0_4 = arith.constant 0 : index
    %4 = vector.load %arg3[%c0_3, %c0_4] : memref<256x128xbf16, #tpu.memory_space<vmem>>, vector<256x128xbf16>
    tpu.vector_store %arg3[%c0_3, %c0_4], %3 {strides = array<i32>} : memref<256x128xbf16, #tpu.memory_space<vmem>>, vector<256x128xbf16>,
    %cst_5 = arith.constant dense<0.000000e+00> : vector<128xf32>
    %5 = vector.multi_reduction <add>, %2, %cst_5 [0] : vector<256x128xf32> to vector<128xf32>
    %6 = vector.shape_cast %5 : vector<128xf32> to vector<1x128xf32>
    %7 = arith.mulf %2, %2 : vector<256x128xf32>
    %cst_6 = arith.constant dense<0.000000e+00> : vector<128xf32>
    %8 = vector.multi_reduction <add>, %7, %cst_6 [0] : vector<256x128xf32> to vector<128xf32>
    %9 = vector.shape_cast %8 : vector<128xf32> to vector<1x128xf32>
    %10 = vector.shape_cast %6 : vector<1x128xf32> to vector<1x1x128xf32>
    %c0_7 = arith.constant 0 : index
    %c0_8 = arith.constant 0 : index
    %c0_9 = arith.constant 0 : index
    %11 = vector.load %arg4[%c0_7, %c0_8, %c0_9] : memref<1x1x128xf32, #tpu.memory_space<vmem>>, vector<1x1x128xf32>
    tpu.vector_store %arg4[%c0_7, %c0_8, %c0_9], %10 {strides = array<i32>} : memref<1x1x128xf32, #tpu.memory_space<vmem>>, vector<1x1x128xf32>,
    %12 = vector.shape_cast %9 : vector<1x128xf32> to vector<1x1x128xf32>
    %c0_10 = arith.constant 0 : index
    %c0_11 = arith.constant 0 : index
    %c0_12 = arith.constant 0 : index
    %13 = vector.load %arg5[%c0_10, %c0_11, %c0_12] : memref<1x1x128xf32, #tpu.memory_space<vmem>>, vector<1x1x128xf32>
    tpu.vector_store %arg5[%c0_10, %c0_11, %c0_12], %12 {strides = array<i32>} : memref<1x1x128xf32, #tpu.memory_space<vmem>>, vector<1x1x128xf32>,
    return
  }
  func.func @transform_0(%arg0: i32) -> (i32, i32) {
    %c0_i32 = arith.constant 0 : i32
    %c0_i32_0 = arith.constant 0 : i32
    return %arg0, %c0_i32 : i32, i32
  }
  func.func @transform_1(%arg0: i32) -> (i32, i32) {
    %c0_i32 = arith.constant 0 : i32
    %c0_i32_0 = arith.constant 0 : i32
    %c0_i32_1 = arith.constant 0 : i32
    return %c0_i32, %c0_i32_0 : i32, i32
  }
  func.func @transform_2(%arg0: i32) -> (i32, i32) {
    %c0_i32 = arith.constant 0 : i32
    %c0_i32_0 = arith.constant 0 : i32
    return %arg0, %c0_i32 : i32, i32
  }
  func.func @transform_3(%arg0: i32) -> (i32, i32, i32) {
    %c0_i32 = arith.constant 0 : i32
    %c0_i32_0 = arith.constant 0 : i32
    %c0_i32_1 = arith.constant 0 : i32
    return %arg0, %c0_i32, %c0_i32_0 : i32, i32, i32
  }
  func.func @transform_4(%arg0: i32) -> (i32, i32, i32) {
    %c0_i32 = arith.constant 0 : i32
    %c0_i32_0 = arith.constant 0 : i32
    %c0_i32_1 = arith.constant 0 : i32
    return %arg0, %c0_i32, %c0_i32_0 : i32, i32, i32
  }
}

</mosaic_0001>

<llo_original>
// kernel: tpu_custom_call.1
$region0: #{tpu_custom_call.1}
  #allocation0 [shape = 'u32[]', space=smem, size = 0x4, offset = 0x4, fixed_abs, tag = 'smem constant byte address 0x4 - core index']
  #allocation1 [shape = 'u32[72,128]{1,0:T(1,128)}', space=vmem, size = 0x9000, scoped, tag = 'internal scratch']
  %s0 = inlined_call_operand.vmem [shape: bf16[512,36], index: 0, kind: input, shape index: {}]
  %s1 = inlined_call_operand.vmem [shape: bf16[36,128], index: 1, kind: input, shape index: {}]
  %s2 = inlined_call_operand.hbm [shape: bf16[512,128], index: 2, kind: output, shape index: {0}]
  %s3 = inlined_call_operand.hbm [shape: f32[2,1,128], index: 3, kind: output, shape index: {1}]
  %s4 = inlined_call_operand.hbm [shape: f32[2,1,128], index: 4, kind: output, shape index: {2}]
  %5 = xla_tuple %s2, %s3, %s4
  %s6 = sld [smem:[#allocation0]]
  $region57: #{tpu_custom_call.1} parent=0
    _
  %s8 = ssub.s32 1, %s6
  %s9 = scalar_select 0, %s8, %s6
  $region1: #{tpu_custom_call.1} parent=0
    #allocation2 [shape = 'u8[131072]{0}', space=vmem, size = 0x20000, scoped, tag = 'output window, operand 0']
    #allocation3 [shape = 's32[2]{0}', space=sflag, size = 0x8, scoped, tag = 'scoped memory for tpu_custom_call.1']
    #allocation4 [shape = 'u8[1024]{0}', space=vmem, size = 0x400, scoped, tag = 'output window, operand 1']
    #allocation5 [shape = 's32[2]{0}', space=sflag, size = 0x8, scoped, tag = 'scoped memory for tpu_custom_call.1']
    #allocation6 [shape = 'u8[1024]{0}', space=vmem, size = 0x400, scoped, tag = 'output window, operand 2']
    %10 = vsyncpa [#allocation3], 0
    %s11 = scalar_lea.sflag [#allocation3], 1
    %12 = vsyncpa %s11, 0
    %13 = vsyncpa [#allocation5], 0
    %s14 = scalar_lea.sflag [#allocation5], 1
    %15 = vsyncpa %s14, 0
    loop: start=0, step=1, limit=4
    $region2: #{tpu_custom_call.1} parent=1 // loop_pre_header
      _
    $region3: #{tpu_custom_call.1} parent=1 // loop_header
      %s17 = sphi 0, %s21
      %p18 = scmp.ge.s32.totalorder %s17, 4
      %s27 = sphi 0, %s29
      %s30 = sphi 0, %s27
      %s31 = sphi 0, %s30
      %s47 = sphi 0, %s31
      %s51 = sphi 0, %s51
      %s53 = sphi 0, %s51
      %s54 = sphi 0, %s53
      %s68 = sphi 0, %s54
      %s74 = sphi 0, %s76
      %s77 = sphi 0, %s74
      %s78 = sphi 0, %s77
      %s94 = sphi 0, %s78
      %s100 = sphi 0, %s102
      %s103 = sphi 0, %s100
      %s104 = sphi 0, %s103
      %s120 = sphi 0, %s104
      %s126 = sphi 0, %s128
      %s129 = sphi 0, %s126
      %s130 = sphi 0, %s129
      %s146 = sphi 0, %s130
    $region4: #{tpu_custom_call.1} parent=1 // loop_header_branch
      %20 = sbr.rel (%p18) target = $region8
    $region5: #{tpu_custom_call.1} parent=1 // loop_body
      %s22 = ssub.s32 %s17, 1
      %s23 = ssub.s32 %s17, 2
      %s24 = sadd.s32 %s17, 1
      %s25 = ssub.s32 %s17, %s24
      %p26 = scmp.eq.s32.totalorder %s25, 0
      %s28 = sadd.s32 %s27, 1
      %s29 = scalar_select %p26, %s27, %s28
      %p32 = pneg %p26
      %p33 = scmp.eq.s32.totalorder %s17, 1
      %p34 = por %p32, %p33
      %p35 = scmp.ne.s32.totalorder %s27, %s30
      %p36 = scmp.eq.s32.totalorder %s17, 0
      %p37 = por %p35, %p36
      %p38 = scmp.ne.s32.totalorder %s27, %s30
      %p39 = scmp.eq.s32.totalorder %s22, 1
      %p40 = por %p38, %p39
      %p41 = scmp.ne.s32.totalorder %s30, %s31
      %p42 = scmp.eq.s32.totalorder %s22, 0
      %p43 = por %p41, %p42
      %p44 = scmp.ne.s32.totalorder %s30, %s31
      %p45 = scmp.eq.s32.totalorder %s23, 1
      %p46 = por %p44, %p45
      %p48 = scmp.ne.s32.totalorder %s31, %s47
      %p49 = scmp.eq.s32.totalorder %s23, 0
      %p50 = por %p48, %p49
      %s52 = sadd.s32 %s51, 1
      %p55 = scmp.eq.s32.totalorder %s17, 1
      %p56 = scmp.ne.s32.totalorder %s51, %s53
      %p57 = scmp.eq.s32.totalorder %s17, 0
      %p58 = por %p56, %p57
      %p59 = scmp.ne.s32.totalorder %s51, %s53
      %p60 = scmp.eq.s32.totalorder %s22, 1
      %p61 = por %p59, %p60
      %p62 = scmp.ne.s32.totalorder %s53, %s54
      %p63 = scmp.eq.s32.totalorder %s22, 0
      %p64 = por %p62, %p63
      %p65 = scmp.ne.s32.totalorder %s53, %s54
      %p66 = scmp.eq.s32.totalorder %s23, 1
      %p67 = por %p65, %p66
      %p69 = scmp.ne.s32.totalorder %s54, %s68
      %p70 = scmp.eq.s32.totalorder %s23, 0
      %p71 = por %p69, %p70
      %s72 = ssub.s32 %s17, %s24
      %p73 = scmp.eq.s32.totalorder %s72, 0
      %s75 = sadd.s32 %s74, 1
      %s76 = scalar_select %p73, %s74, %s75
      %p79 = pneg %p73
      %p80 = scmp.eq.s32.totalorder %s17, 1
      %p81 = por %p79, %p80
      %p82 = scmp.ne.s32.totalorder %s74, %s77
      %p83 = scmp.eq.s32.totalorder %s17, 0
      %p84 = por %p82, %p83
      %p85 = scmp.ne.s32.totalorder %s74, %s77
      %p86 = scmp.eq.s32.totalorder %s22, 1
      %p87 = por %p85, %p86
      %p88 = scmp.ne.s32.totalorder %s77, %s78
      %p89 = scmp.eq.s32.totalorder %s22, 0
      %p90 = por %p88, %p89
      %p91 = scmp.ne.s32.totalorder %s77, %s78
      %p92 = scmp.eq.s32.totalorder %s23, 1
      %p93 = por %p91, %p92
      %p95 = scmp.ne.s32.totalorder %s78, %s94
      %p96 = scmp.eq.s32.totalorder %s23, 0
      %p97 = por %p95, %p96
      %s98 = ssub.s32 %s17, %s24
      %p99 = scmp.eq.s32.totalorder %s98, 0
      %s101 = sadd.s32 %s100, 1
      %s102 = scalar_select %p99, %s100, %s101
      %p105 = pneg %p99
      %p106 = scmp.eq.s32.totalorder %s17, 1
      %p107 = por %p105, %p106
      %p108 = scmp.ne.s32.totalorder %s100, %s103
      %p109 = scmp.eq.s32.totalorder %s17, 0
      %p110 = por %p108, %p109
      %p111 = scmp.ne.s32.totalorder %s100, %s103
      %p112 = scmp.eq.s32.totalorder %s22, 1
      %p113 = por %p111, %p112
      %p114 = scmp.ne.s32.totalorder %s103, %s104
      %p115 = scmp.eq.s32.totalorder %s22, 0
      %p116 = por %p114, %p115
      %p117 = scmp.ne.s32.totalorder %s103, %s104
      %p118 = scmp.eq.s32.totalorder %s23, 1
      %p119 = por %p117, %p118
      %p121 = scmp.ne.s32.totalorder %s104, %s120
      %p122 = scmp.eq.s32.totalorder %s23, 0
      %p123 = por %p121, %p122
      %s124 = ssub.s32 %s17, %s24
      %p125 = scmp.eq.s32.totalorder %s124, 0
      %s127 = sadd.s32 %s126, 1
      %s128 = scalar_select %p125, %s126, %s127
      %p131 = pneg %p125
      %p132 = scmp.eq.s32.totalorder %s17, 1
      %p133 = por %p131, %p132
      %p134 = scmp.ne.s32.totalorder %s126, %s129
      %p135 = scmp.eq.s32.totalorder %s17, 0
      %p136 = por %p134, %p135
      %p137 = scmp.ne.s32.totalorder %s126, %s129
      %p138 = scmp.eq.s32.totalorder %s22, 1
      %p139 = por %p137, %p138
      %p140 = scmp.ne.s32.totalorder %s129, %s130
      %p141 = scmp.eq.s32.totalorder %s22, 0
      %p142 = por %p140, %p141
      %p143 = scmp.ne.s32.totalorder %s129, %s130
      %p144 = scmp.eq.s32.totalorder %s23, 1
      %p145 = por %p143, %p144
      %p147 = scmp.ne.s32.totalorder %s130, %s146
      %p148 = scmp.eq.s32.totalorder %s23, 0
      %p149 = por %p147, %p148
      %p150 = scmp.le.s32.totalorder 1, %s17
      %p151 = scmp.lt.s32.totalorder %s17, 3
      %p152 = pnand %p150, %p151
      %p153 = pneg %p152
      // Predicated region
      $region9: #{tpu_custom_call.1} parent=5 // pred_check
        _
      $region10: #{tpu_custom_call.1} parent=5 // pred_check_branch
        %155 = sbr.rel (%p152) target = $region12
      $region11: #{tpu_custom_call.1} parent=5 // pred_region
        %s156 = ssub.s32 %s17, 1
        // Predicated region
        $region13: #{tpu_custom_call.1} parent=11 // pred_check
          %p157 = pneg %p64
        $region14: #{tpu_custom_call.1} parent=11 // pred_check_branch
          %159 = sbr.rel (%p157) target = $region16
        $region15: #{tpu_custom_call.1} parent=11 // pred_region
          _
        $region16: #{tpu_custom_call.1} parent=11 // pred_fallthru
          _
      $region12: #{tpu_custom_call.1} parent=5 // pred_fallthru
        _
      %p160 = scmp.lt.s32.totalorder %s17, 2
      // Predicated region
      $region17: #{tpu_custom_call.1} parent=5 // pred_check
        %p161 = pneg %p160
      $region18: #{tpu_custom_call.1} parent=5 // pred_check_branch
        %163 = sbr.rel (%p161) target = $region20
      $region19: #{tpu_custom_call.1} parent=5 // pred_region
        // Predicated region
        $region21: #{tpu_custom_call.1} parent=19 // pred_check
          %p164 = pneg %p37
        $region22: #{tpu_custom_call.1} parent=19 // pred_check_branch
          %166 = sbr.rel (%p164) target = $region24
        $region23: #{tpu_custom_call.1} parent=19 // pred_region
          %s167 = smul.u32 32, %s17
          %p168 = scmp.lt.s32.totalorder %s167, 63
          %s169 = scalar_select %p168, %s167, 63
          %s170 = smul.addr %s169, 4
          %s171 = scalar_lea.vmem %s0, %s170
          %s172 = smul.u32 32, %s17
        $region24: #{tpu_custom_call.1} parent=19 // pred_fallthru
          _
      $region20: #{tpu_custom_call.1} parent=5 // pred_fallthru
        _
      %p173 = scmp.le.s32.totalorder 1, %s17
      %p174 = scmp.lt.s32.totalorder %s17, 3
      %p175 = pnand %p173, %p174
      %p176 = pneg %p175
      // Predicated region
      $region25: #{tpu_custom_call.1} parent=5 // pred_check
        _
      $region26: #{tpu_custom_call.1} parent=5 // pred_check_branch
        %178 = sbr.rel (%p175) target = $region28
      $region27: #{tpu_custom_call.1} parent=5 // pred_region
        %s179 = ssub.s32 %s17, 1
        %s180 = smul.u32 32, %s22
        %p181 = scmp.lt.s32.totalorder %s180, 63
        %s182 = scalar_select %p181, %s180, 63
        %s183 = smul.addr %s182, 4
        %s184 = scalar_lea.vmem %s0, %s183
        %p185 = pneg %p43
        %p186 = pneg %p40
        %p187 = pneg %p64
        %p188 = pneg %p61
        %p189 = pneg %p90
        %p190 = pneg %p87
        %s191 = sand.u32 %s77, 1
        %s192 = scalar_lea.sflag [#allocation3], %s191
        %s193 = sand.u32 %s77, 1
        %s194 = smul.addr %s193, 128
        %s195 = scalar_lea.vmem [#allocation2], %s194
        %p196 = pneg %p116
        %p197 = pneg %p113
        %s198 = sand.u32 %s22, 1
        %s199 = scalar_lea.sflag [#allocation5], %s198
        %s200 = sand.u32 %s103, 1
        %s201 = scalar_lea.vmem [#allocation4], %s200
        %p202 = pneg %p142
        %p203 = pneg %p139
        %s204 = sand.u32 %s22, 1
        %s205 = scalar_lea.sflag [#allocation5], %s204
        %s206 = sand.u32 %s129, 1
        %s207 = scalar_lea.vmem [#allocation6], %s206
        %s208 = smul.u32 32, %s22
        %p209 = scmp.lt.s32.totalorder %s208, 63
        %s210 = scalar_select %p209, %s208, 63
        %s211 = smul.addr %s210, 4
        %s212 = scalar_lea.vmem %s0, %s211
        %s213 = smul.u32 32, %s22
        %s214 = smul.u32 32, %s22
        %v216 = vld [vmem:[%s212] sm:$0xf]
        %v217 = vld [vmem:[%s212 + $0x4] sm:$0xf]
        %v218 = vld [vmem:[%s212 + $0x8] sm:$0xf]
        %v219 = vld [vmem:[%s212 + $0xc] sm:$0xf]
        %v220 = vld [vmem:[%s212 + $0x10] sm:$0xf]
        %v221 = vld [vmem:[%s212 + $0x14] sm:$0xf]
        %v222 = vld [vmem:[%s212 + $0x18] sm:$0xf]
        %v223 = vld [vmem:[%s212 + $0x1c] sm:$0xf]
        %v224 = vld [vmem:[%s212 + $0x20] sm:$0xf]
        %v225 = vld [vmem:[%s212 + $0x24] sm:$0xf]
        %v226 = vld [vmem:[%s212 + $0x28] sm:$0xf]
        %v227 = vld [vmem:[%s212 + $0x2c] sm:$0xf]
        %v228 = vld [vmem:[%s212 + $0x30] sm:$0xf]
        %v229 = vld [vmem:[%s212 + $0x34] sm:$0xf]
        %v230 = vld [vmem:[%s212 + $0x38] sm:$0xf]
        %v231 = vld [vmem:[%s212 + $0x3c] sm:$0xf]
        %v232 = vld [vmem:[%s212 + $0x40] sm:$0xf]
        %v233 = vld [vmem:[%s212 + $0x44] sm:$0xf]
        %v234 = vld [vmem:[%s212 + $0x48] sm:$0xf]
        %v235 = vld [vmem:[%s212 + $0x4c] sm:$0xf]
        %v236 = vld [vmem:[%s212 + $0x50] sm:$0xf]
        %v237 = vld [vmem:[%s212 + $0x54] sm:$0xf]
        %v238 = vld [vmem:[%s212 + $0x58] sm:$0xf]
        %v239 = vld [vmem:[%s212 + $0x5c] sm:$0xf]
        %v240 = vld [vmem:[%s212 + $0x60] sm:$0xf]
        %v241 = vld [vmem:[%s212 + $0x64] sm:$0xf]
        %v242 = vld [vmem:[%s212 + $0x68] sm:$0xf]
        %v243 = vld [vmem:[%s212 + $0x6c] sm:$0xf]
        %v244 = vld [vmem:[%s212 + $0x70] sm:$0xf]
        %v245 = vld [vmem:[%s212 + $0x74] sm:$0xf]
        %v246 = vld [vmem:[%s212 + $0x78] sm:$0xf]
        %v247 = vld [vmem:[%s212 + $0x7c] sm:$0xf]
        %v248 = vld [vmem:[%s1] sm:$0xf]
        %v249 = vld [vmem:[%s1 + $0x4] sm:$0xf]
        %v250 = vld [vmem:[%s1 + $0x8] sm:$0xf]
        %v251 = vld [vmem:[%s1 + $0xc] sm:$0xf]
        %v252 = vld [vmem:[%s1 + $0x10] sm:$0x3]
        %v285 = vunpack.c.l.b16 %v216
        %v286 = vunpack.c.l.b16 %v217
        %v287 = vunpack.c.l.b16 %v218
        %v288 = vunpack.c.l.b16 %v219
        %v289 = vunpack.c.l.b16 %v220
        %v290 = vunpack.c.l.b16 %v221
        %v291 = vunpack.c.l.b16 %v222
        %v292 = vunpack.c.l.b16 %v223
        %v293 = vunpack.c.l.b16 %v224
        %v294 = vunpack.c.l.b16 %v225
        %v295 = vunpack.c.l.b16 %v226
        %v296 = vunpack.c.l.b16 %v227
        %v297 = vunpack.c.l.b16 %v228
        %v298 = vunpack.c.l.b16 %v229
        %v299 = vunpack.c.l.b16 %v230
        %v300 = vunpack.c.l.b16 %v231
        %v301 = vunpack.c.l.b16 %v232
        %v302 = vunpack.c.l.b16 %v233
        %v303 = vunpack.c.l.b16 %v234
        %v304 = vunpack.c.l.b16 %v235
        %v305 = vunpack.c.l.b16 %v236
        %v306 = vunpack.c.l.b16 %v237
        %v307 = vunpack.c.l.b16 %v238
        %v308 = vunpack.c.l.b16 %v239
        %v309 = vunpack.c.l.b16 %v240
        %v310 = vunpack.c.l.b16 %v241
        %v311 = vunpack.c.l.b16 %v242
        %v312 = vunpack.c.l.b16 %v243
        %v313 = vunpack.c.l.b16 %v244
        %v314 = vunpack.c.l.b16 %v245
        %v315 = vunpack.c.l.b16 %v246
        %v316 = vunpack.c.l.b16 %v247
        %v317 = vpack.c.b16 %v286, %v285
        %v318 = vpack.c.b16 %v288, %v287
        %v319 = vpack.c.b16 %v290, %v289
        %v320 = vpack.c.b16 %v292, %v291
        %v321 = vpack.c.b16 %v294, %v293
        %v322 = vpack.c.b16 %v296, %v295
        %v323 = vpack.c.b16 %v298, %v297
        %v324 = vpack.c.b16 %v300, %v299
        %v325 = vpack.c.b16 %v302, %v301
        %v326 = vpack.c.b16 %v304, %v303
        %v327 = vpack.c.b16 %v306, %v305
        %v328 = vpack.c.b16 %v308, %v307
        %v329 = vpack.c.b16 %v310, %v309
        %v330 = vpack.c.b16 %v312, %v311
        %v331 = vpack.c.b16 %v314, %v313
        %v332 = vpack.c.b16 %v316, %v315
        %v338 = vunpack.c.l.b16 %v248
        %v339 = vunpack.c.l.b16 %v249
        %v340 = vunpack.c.l.b16 %v250
        %v341 = vunpack.c.l.b16 %v251
        %v342 = vunpack.c.l.b16 %v252
        %v343 = vpack.c.b16 %v339, %v338
        %v344 = vpack.c.b16 %v341, %v340
        %v345 = vpack.c.b16 %v342, %v342
        %vm348 = vcmask 293888
        %v350 = vsel %vm348, %v317, 0
        %v353 = vsel %vm348, %v318, 0
        %v356 = vsel %vm348, %v319, 0
        %v359 = vsel %vm348, %v320, 0
        %v362 = vsel %vm348, %v321, 0
        %v365 = vsel %vm348, %v322, 0
        %v368 = vsel %vm348, %v323, 0
        %v371 = vsel %vm348, %v324, 0
        %v374 = vsel %vm348, %v325, 0
        %v377 = vsel %vm348, %v326, 0
        %v380 = vsel %vm348, %v327, 0
        %v383 = vsel %vm348, %v328, 0
        %v386 = vsel %vm348, %v329, 0
        %v389 = vsel %vm348, %v330, 0
        %v392 = vsel %vm348, %v331, 0
        %v395 = vsel %vm348, %v332, 0
        %vm397 = vcmask 1041408
        %v399 = vsel %vm397, %v345, 0
        %401 = vmatpush.bf16.msra.mxu0 0
        %402 = vmatpush.bf16.msra.mxu0 0
        %403 = vmatpush.bf16.msra.mxu0 0
        %404 = vmatpush.bf16.msra.mxu0 0
        %405 = vmatpush.bf16.msra.mxu0 0
        %406 = vmatpush.bf16.msra.mxu0 %v399
        %407 = vmatpush.bf16.msra.mxu0 %v344
        %408 = vmatpush.bf16.msra.mxu0 %v343
        %409 = vmatmul.bf16.gmra.mxu0 %v350
        %v410 = vpop.f32.mrf.mxu0
        %v411 = vadd.f32 0.0, %v410
        %v412 = vpop.f32.mrf.mxu0
        %v413 = vadd.f32 0.0, %v412
        %414 = vmatmul.bf16.gmra.mxu0 %v353
        %v415 = vpop.f32.mrf.mxu0
        %v416 = vadd.f32 0.0, %v415
        %v417 = vpop.f32.mrf.mxu0
        %v418 = vadd.f32 0.0, %v417
        %419 = vmatmul.bf16.gmra.mxu0 %v356
        %v420 = vpop.f32.mrf.mxu0
        %v421 = vadd.f32 0.0, %v420
        %v422 = vpop.f32.mrf.mxu0
        %v423 = vadd.f32 0.0, %v422
        %424 = vmatmul.bf16.gmra.mxu0 %v359
        %v425 = vpop.f32.mrf.mxu0
        %v426 = vadd.f32 0.0, %v425
        %v427 = vpop.f32.mrf.mxu0
        %v428 = vadd.f32 0.0, %v427
        %429 = vmatmul.bf16.gmra.mxu0 %v362
        %v430 = vpop.f32.mrf.mxu0
        %v431 = vadd.f32 0.0, %v430
        %v432 = vpop.f32.mrf.mxu0
        %v433 = vadd.f32 0.0, %v432
        %434 = vmatmul.bf16.gmra.mxu0 %v365
        %v435 = vpop.f32.mrf.mxu0
        %v436 = vadd.f32 0.0, %v435
        %v437 = vpop.f32.mrf.mxu0
        %v438 = vadd.f32 0.0, %v437
        %439 = vmatmul.bf16.gmra.mxu0 %v368
        %v440 = vpop.f32.mrf.mxu0
        %v441 = vadd.f32 0.0, %v440
        %v442 = vpop.f32.mrf.mxu0
        %v443 = vadd.f32 0.0, %v442
        %444 = vmatmul.bf16.gmra.mxu0 %v371
        %v445 = vpop.f32.mrf.mxu0
        %v446 = vadd.f32 0.0, %v445
        %v447 = vpop.f32.mrf.mxu0
        %v448 = vadd.f32 0.0, %v447
        %449 = vmatmul.bf16.gmra.mxu0 %v374
        %v450 = vpop.f32.mrf.mxu0
        %v451 = vadd.f32 0.0, %v450
        %v452 = vpop.f32.mrf.mxu0
        %v453 = vadd.f32 0.0, %v452
        %454 = vmatmul.bf16.gmra.mxu0 %v377
        %v455 = vpop.f32.mrf.mxu0
        %v456 = vadd.f32 0.0, %v455
        %v457 = vpop.f32.mrf.mxu0
        %v458 = vadd.f32 0.0, %v457
        %459 = vmatmul.bf16.gmra.mxu0 %v380
        %v460 = vpop.f32.mrf.mxu0
        %v461 = vadd.f32 0.0, %v460
        %v462 = vpop.f32.mrf.mxu0
        %v463 = vadd.f32 0.0, %v462
        %464 = vmatmul.bf16.gmra.mxu0 %v383
        %v465 = vpop.f32.mrf.mxu0
        %v466 = vadd.f32 0.0, %v465
        %v467 = vpop.f32.mrf.mxu0
        %v468 = vadd.f32 0.0, %v467
        %469 = vmatmul.bf16.gmra.mxu0 %v386
        %v470 = vpop.f32.mrf.mxu0
        %v471 = vadd.f32 0.0, %v470
        %v472 = vpop.f32.mrf.mxu0
        %v473 = vadd.f32 0.0, %v472
        %474 = vmatmul.bf16.gmra.mxu0 %v389
        %v475 = vpop.f32.mrf.mxu0
        %v476 = vadd.f32 0.0, %v475
        %v477 = vpop.f32.mrf.mxu0
        %v478 = vadd.f32 0.0, %v477
        %479 = vmatmul.bf16.gmra.mxu0 %v392
        %v480 = vpop.f32.mrf.mxu0
        %v481 = vadd.f32 0.0, %v480
        %v482 = vpop.f32.mrf.mxu0
        %v483 = vadd.f32 0.0, %v482
        %484 = vmatmul.bf16.gmra.mxu0 %v395
        %v485 = vpop.f32.mrf.mxu0
        %v486 = vadd.f32 0.0, %v485
        %v487 = vpop.f32.mrf.mxu0
        %v488 = vadd.f32 0.0, %v487
        %489 = vdwg.mxu0
        %v490 = vpack.c.bf16 %v411, %v411
        %v491 = vpack.c.bf16 %v413, %v413
        %v492 = vpack.c.bf16 %v416, %v416
        %v493 = vpack.c.bf16 %v418, %v418
        %v494 = vpack.c.bf16 %v421, %v421
        %v495 = vpack.c.bf16 %v423, %v423
        %v496 = vpack.c.bf16 %v426, %v426
        %v497 = vpack.c.bf16 %v428, %v428
        %v498 = vpack.c.bf16 %v431, %v431
        %v499 = vpack.c.bf16 %v433, %v433
        %v500 = vpack.c.bf16 %v436, %v436
        %v501 = vpack.c.bf16 %v438, %v438
        %v502 = vpack.c.bf16 %v441, %v441
        %v503 = vpack.c.bf16 %v443, %v443
        %v504 = vpack.c.bf16 %v446, %v446
        %v505 = vpack.c.bf16 %v448, %v448
        %v506 = vpack.c.bf16 %v451, %v451
        %v507 = vpack.c.bf16 %v453, %v453
        %v508 = vpack.c.bf16 %v456, %v456
        %v509 = vpack.c.bf16 %v458, %v458
        %v510 = vpack.c.bf16 %v461, %v461
        %v511 = vpack.c.bf16 %v463, %v463
        %v512 = vpack.c.bf16 %v466, %v466
        %v513 = vpack.c.bf16 %v468, %v468
        %v514 = vpack.c.bf16 %v471, %v471
        %v515 = vpack.c.bf16 %v473, %v473
        %v516 = vpack.c.bf16 %v476, %v476
        %v517 = vpack.c.bf16 %v478, %v478
        %v518 = vpack.c.bf16 %v481, %v481
        %v519 = vpack.c.bf16 %v483, %v483
        %v520 = vpack.c.bf16 %v486, %v486
        %v521 = vpack.c.bf16 %v488, %v488
        %522 = vst [vmem:[%s195] sm:$0xf] %v490
        %523 = vst [vmem:[%s195 + $0x4] sm:$0xf] %v491
        %524 = vst [vmem:[%s195 + $0x8] sm:$0xf] %v492
        %525 = vst [vmem:[%s195 + $0xc] sm:$0xf] %v493
        %526 = vst [vmem:[%s195 + $0x10] sm:$0xf] %v494
        %527 = vst [vmem:[%s195 + $0x14] sm:$0xf] %v495
        %528 = vst [vmem:[%s195 + $0x18] sm:$0xf] %v496
        %529 = vst [vmem:[%s195 + $0x1c] sm:$0xf] %v497
        %530 = vst [vmem:[%s195 + $0x20] sm:$0xf] %v498
        %531 = vst [vmem:[%s195 + $0x24] sm:$0xf] %v499
        %532 = vst [vmem:[%s195 + $0x28] sm:$0xf] %v500
        %533 = vst [vmem:[%s195 + $0x2c] sm:$0xf] %v501
        %534 = vst [vmem:[%s195 + $0x30] sm:$0xf] %v502
        %535 = vst [vmem:[%s195 + $0x34] sm:$0xf] %v503
        %536 = vst [vmem:[%s195 + $0x38] sm:$0xf] %v504
        %537 = vst [vmem:[%s195 + $0x3c] sm:$0xf] %v505
        %538 = vst [vmem:[%s195 + $0x40] sm:$0xf] %v506
        %539 = vst [vmem:[%s195 + $0x44] sm:$0xf] %v507
        %540 = vst [vmem:[%s195 + $0x48] sm:$0xf] %v508
        %541 = vst [vmem:[%s195 + $0x4c] sm:$0xf] %v509
        %542 = vst [vmem:[%s195 + $0x50] sm:$0xf] %v510
        %543 = vst [vmem:[%s195 + $0x54] sm:$0xf] %v511
        %544 = vst [vmem:[%s195 + $0x58] sm:$0xf] %v512
        %545 = vst [vmem:[%s195 + $0x5c] sm:$0xf] %v513
        %546 = vst [vmem:[%s195 + $0x60] sm:$0xf] %v514
        %547 = vst [vmem:[%s195 + $0x64] sm:$0xf] %v515
        %548 = vst [vmem:[%s195 + $0x68] sm:$0xf] %v516
        %549 = vst [vmem:[%s195 + $0x6c] sm:$0xf] %v517
        %550 = vst [vmem:[%s195 + $0x70] sm:$0xf] %v518
        %551 = vst [vmem:[%s195 + $0x74] sm:$0xf] %v519
        %552 = vst [vmem:[%s195 + $0x78] sm:$0xf] %v520
        %553 = vst [vmem:[%s195 + $0x7c] sm:$0xf] %v521
        %v554 = vadd.f32 %v411, %v413
        %v555 = vadd.f32 %v554, %v416
        %v556 = vadd.f32 %v555, %v418
        %v557 = vadd.f32 %v556, %v421
        %v558 = vadd.f32 %v557, %v423
        %v559 = vadd.f32 %v558, %v426
        %v560 = vadd.f32 %v559, %v428
        %v561 = vadd.f32 %v560, %v431
        %v562 = vadd.f32 %v561, %v433
        %v563 = vadd.f32 %v562, %v436
        %v564 = vadd.f32 %v563, %v438
        %v565 = vadd.f32 %v564, %v441
        %v566 = vadd.f32 %v565, %v443
        %v567 = vadd.f32 %v566, %v446
        %v568 = vadd.f32 %v567, %v448
        %v569 = vadd.f32 %v568, %v451
        %v570 = vadd.f32 %v569, %v453
        %v571 = vadd.f32 %v570, %v456
        %v572 = vadd.f32 %v571, %v458
        %v573 = vadd.f32 %v572, %v461
        %v574 = vadd.f32 %v573, %v463
        %v575 = vadd.f32 %v574, %v466
        %v576 = vadd.f32 %v575, %v468
        %v577 = vadd.f32 %v576, %v471
        %v578 = vadd.f32 %v577, %v473
        %v579 = vadd.f32 %v578, %v476
        %v580 = vadd.f32 %v579, %v478
        %v581 = vadd.f32 %v580, %v481
        %v582 = vadd.f32 %v581, %v483
        %v583 = vadd.f32 %v582, %v486
        %v584 = vadd.f32 %v583, %v488
        %v585 = vrot.slane %v584, 4
        %v586 = vadd.f32 %v584, %v585
        %v587 = vrot.slane %v586, 2
        %v588 = vadd.f32 %v586, %v587
        %v589 = vrot.slane %v588, 1
        %v590 = vadd.f32 %v588, %v589
        %v591 = vmul.f32 %v411, %v411
        %v592 = vmul.f32 %v413, %v413
        %v593 = vmul.f32 %v416, %v416
        %v594 = vmul.f32 %v418, %v418
        %v595 = vmul.f32 %v421, %v421
        %v596 = vmul.f32 %v423, %v423
        %v597 = vmul.f32 %v426, %v426
        %v598 = vmul.f32 %v428, %v428
        %v599 = vmul.f32 %v431, %v431
        %v600 = vmul.f32 %v433, %v433
        %v601 = vmul.f32 %v436, %v436
        %v602 = vmul.f32 %v438, %v438
        %v603 = vmul.f32 %v441, %v441
        %v604 = vmul.f32 %v443, %v443
        %v605 = vmul.f32 %v446, %v446
        %v606 = vmul.f32 %v448, %v448
        %v607 = vmul.f32 %v451, %v451
        %v608 = vmul.f32 %v453, %v453
        %v609 = vmul.f32 %v456, %v456
        %v610 = vmul.f32 %v458, %v458
        %v611 = vmul.f32 %v461, %v461
        %v612 = vmul.f32 %v463, %v463
        %v613 = vmul.f32 %v466, %v466
        %v614 = vmul.f32 %v468, %v468
        %v615 = vmul.f32 %v471, %v471
        %v616 = vmul.f32 %v473, %v473
        %v617 = vmul.f32 %v476, %v476
        %v618 = vmul.f32 %v478, %v478
        %v619 = vmul.f32 %v481, %v481
        %v620 = vmul.f32 %v483, %v483
        %v621 = vmul.f32 %v486, %v486
        %v622 = vmul.f32 %v488, %v488
        %v623 = vadd.f32 %v591, %v592
        %v624 = vadd.f32 %v623, %v593
        %v625 = vadd.f32 %v624, %v594
        %v626 = vadd.f32 %v625, %v595
        %v627 = vadd.f32 %v626, %v596
        %v628 = vadd.f32 %v627, %v597
        %v629 = vadd.f32 %v628, %v598
        %v630 = vadd.f32 %v629, %v599
        %v631 = vadd.f32 %v630, %v600
        %v632 = vadd.f32 %v631, %v601
        %v633 = vadd.f32 %v632, %v602
        %v634 = vadd.f32 %v633, %v603
        %v635 = vadd.f32 %v634, %v604
        %v636 = vadd.f32 %v635, %v605
        %v637 = vadd.f32 %v636, %v606
        %v638 = vadd.f32 %v637, %v607
        %v639 = vadd.f32 %v638, %v608
        %v640 = vadd.f32 %v639, %v609
        %v641 = vadd.f32 %v640, %v610
        %v642 = vadd.f32 %v641, %v611
        %v643 = vadd.f32 %v642, %v612
        %v644 = vadd.f32 %v643, %v613
        %v645 = vadd.f32 %v644, %v614
        %v646 = vadd.f32 %v645, %v615
        %v647 = vadd.f32 %v646, %v616
        %v648 = vadd.f32 %v647, %v617
        %v649 = vadd.f32 %v648, %v618
        %v650 = vadd.f32 %v649, %v619
        %v651 = vadd.f32 %v650, %v620
        %v652 = vadd.f32 %v651, %v621
        %v653 = vadd.f32 %v652, %v622
        %v654 = vrot.slane %v653, 4
        %v655 = vadd.f32 %v653, %v654
        %v656 = vrot.slane %v655, 2
        %v657 = vadd.f32 %v655, %v656
        %v658 = vrot.slane %v657, 1
        %v659 = vadd.f32 %v657, %v658
        %660 = vst [vmem:[%s201] sm:$0x1] %v590
        %661 = vst [vmem:[%s207] sm:$0x1] %v659
        %s662 = sand.u32 %s77, 1
        %s663 = scalar_lea.sflag [#allocation3], %s662
        %s664 = sand.u32 %s77, 1
        %s665 = smul.addr %s664, 128
        %s666 = scalar_lea.vmem [#allocation2], %s665
        %s667 = sand.u32 %s22, 1
        %s668 = scalar_lea.sflag [#allocation5], %s667
        %s669 = sand.u32 %s103, 1
        %s670 = scalar_lea.vmem [#allocation4], %s669
        %s671 = sand.u32 %s22, 1
        %s672 = scalar_lea.sflag [#allocation5], %s671
        %s673 = sand.u32 %s129, 1
        %s674 = scalar_lea.vmem [#allocation6], %s673
        // Predicated region
        $region29: #{tpu_custom_call.1} parent=27 // pred_check
          %p675 = pneg %p87
        $region30: #{tpu_custom_call.1} parent=27 // pred_check_branch
          %677 = sbr.rel (%p675) target = $region32
        $region31: #{tpu_custom_call.1} parent=27 // pred_region
          %s678 = smul.u32 32, %s22
          %680 = vsyncadd %s663, 0
          %s681 = smul.addr %s678, 4
          %s682 = scalar_lea.hbm %s2, %s681
          %s683 = sshll.u32 %s666, 4
          %s684 = int_to_ptr.vmem [resolvable:$true] %s683
          %s685 = sshll.u32 %s682, 4
          %s686 = int_to_ptr.hbm [resolvable:$true] %s685
          %691 = dma.vmem_to_hbm [thread:$0]  %s684, 2048, %s686, %s663, 64, 64, 4
        $region32: #{tpu_custom_call.1} parent=27 // pred_fallthru
          _
        // Predicated region
        $region33: #{tpu_custom_call.1} parent=27 // pred_check
          %p692 = pneg %p113
        $region34: #{tpu_custom_call.1} parent=27 // pred_check_branch
          %694 = sbr.rel (%p692) target = $region36
        $region35: #{tpu_custom_call.1} parent=27 // pred_region
          %696 = vsyncadd %s668, 0
          %s697 = scalar_lea.hbm %s3, %s22
          %s699 = sshll.u32 %s670, 4
          %s700 = int_to_ptr.vmem [resolvable:$true] %s699
          %s701 = sshll.u32 %s697, 4
          %s702 = int_to_ptr.hbm [resolvable:$true] %s701
          %704 = dma.vmem_to_hbm [thread:$0]  %s700, 16, %s702, %s668
        $region36: #{tpu_custom_call.1} parent=27 // pred_fallthru
          _
        // Predicated region
        $region37: #{tpu_custom_call.1} parent=27 // pred_check
          %p705 = pneg %p139
        $region38: #{tpu_custom_call.1} parent=27 // pred_check_branch
          %707 = sbr.rel (%p705) target = $region40
        $region39: #{tpu_custom_call.1} parent=27 // pred_region
          %709 = vsyncadd %s672, 0
          %s710 = scalar_lea.hbm %s4, %s22
          %s712 = sshll.u32 %s674, 4
          %s713 = int_to_ptr.vmem [resolvable:$true] %s712
          %s714 = sshll.u32 %s710, 4
          %s715 = int_to_ptr.hbm [resolvable:$true] %s714
          %717 = dma.vmem_to_hbm [thread:$0]  %s713, 16, %s715, %s672
        $region40: #{tpu_custom_call.1} parent=27 // pred_fallthru
          _
      $region28: #{tpu_custom_call.1} parent=5 // pred_fallthru
        _
      %p718 = scmp.le.s32.totalorder 2, %s17
      // Predicated region
      $region41: #{tpu_custom_call.1} parent=5 // pred_check
        %p719 = pneg %p718
      $region42: #{tpu_custom_call.1} parent=5 // pred_check_branch
        %721 = sbr.rel (%p719) target = $region44
      $region43: #{tpu_custom_call.1} parent=5 // pred_region
        %s722 = ssub.s32 %s17, 2
        // Predicated region
        $region45: #{tpu_custom_call.1} parent=43 // pred_check
          %p723 = pneg %p93
        $region46: #{tpu_custom_call.1} parent=43 // pred_check_branch
          %725 = sbr.rel (%p723) target = $region48
        $region47: #{tpu_custom_call.1} parent=43 // pred_region
          %s726 = sand.u32 %s78, 1
          %s727 = scalar_lea.sflag [#allocation3], %s726
          %s728 = sand.u32 %s78, 1
          %s729 = smul.addr %s728, 128
          %s730 = scalar_lea.vmem [#allocation2], %s729
          %732 = dma.done %s727, 2048
        $region48: #{tpu_custom_call.1} parent=43 // pred_fallthru
          _
        // Predicated region
        $region49: #{tpu_custom_call.1} parent=43 // pred_check
          %p733 = pneg %p119
        $region50: #{tpu_custom_call.1} parent=43 // pred_check_branch
          %735 = sbr.rel (%p733) target = $region52
        $region51: #{tpu_custom_call.1} parent=43 // pred_region
          %s736 = sand.u32 %s23, 1
          %s737 = scalar_lea.sflag [#allocation5], %s736
          %s738 = sand.u32 %s104, 1
          %s739 = scalar_lea.vmem [#allocation4], %s738
          %741 = dma.done %s737, 16
        $region52: #{tpu_custom_call.1} parent=43 // pred_fallthru
          _
        // Predicated region
        $region53: #{tpu_custom_call.1} parent=43 // pred_check
          %p742 = pneg %p145
        $region54: #{tpu_custom_call.1} parent=43 // pred_check_branch
          %744 = sbr.rel (%p742) target = $region56
        $region55: #{tpu_custom_call.1} parent=43 // pred_region
          %s745 = sand.u32 %s23, 1
          %s746 = scalar_lea.sflag [#allocation5], %s745
          %s747 = sand.u32 %s130, 1
          %s748 = scalar_lea.vmem [#allocation6], %s747
          %750 = dma.done %s746, 16
        $region56: #{tpu_custom_call.1} parent=43 // pred_fallthru
          _
      $region44: #{tpu_custom_call.1} parent=5 // pred_fallthru
        _
    $region6: #{tpu_custom_call.1} parent=1 // loop_footer
      %s21 = sadd.s32 1, %s17
    $region7: #{tpu_custom_call.1} parent=1 // loop_footer_branch
      %16 = sbr.rel target = $region3
    $region8: #{tpu_custom_call.1} parent=1 // loop_exit
      _
    %751 = vsyncpa [#allocation3], 1
    %s752 = scalar_lea.sflag [#allocation3], 1
    %753 = vsyncpa %s752, 1
    %754 = vsyncpa [#allocation5], 1
    %s755 = scalar_lea.sflag [#allocation5], 1
    %756 = vsyncpa %s755, 1

</llo_original>
